<compile_context>
chip_gen: v7x
topology: tpu7x:2x2x1
jax: 0.10.0
libtpu: 0.0.40
codegen_flags: <defaults>
</compile_context>

<pallas_src>
import jax
import jax.numpy as jnp
from jax.experimental import pallas as pl
from jax.experimental.pallas import tpu as pltpu

# ---- problem sizes (synthetic, consistent with an SMPLX-style predictor) ----
BATCH     = 2
NUM_KPTS  = 68                      # face keypoints
KPT_DIM   = 3
KP_FLAT   = NUM_KPTS * KPT_DIM      # 204
NUM_BETAS = 10
NUM_EXPR  = 10                      # expression coefficients
JAW_DIM   = 3
POSE_DIM  = 165                     # SMPLX full pose (55 joints * 3); jaw at 63:66
HIDDEN    = 256
OUT_PAD   = 128                     # lane-dense padded output slab width
JAW_COL   = 63                      # jaw lives at slab lanes 63:66 (pose-aligned)
TB_CAP    = 1024                    # batch-tile cap (VMEM-safe on v5e/v6e/v7x)


def _round_up(x, m):
    return ((x + m - 1) // m) * m


def _predictor_kernel(kp_ref, beta_ref, pose_ref,
                      w1k_ref, w1b_ref, b1_ref,
                      w2_ref, b2_ref, w3_ref, b3_ref,
                      out_ref, pose_out_ref):
    # MLP hot path on the MXU: bf16 operands, f32 accumulation, f32 bias+ReLU.
    kp = kp_ref[...].astype(jnp.bfloat16)          # (TB, 204)
    beta = beta_ref[...].astype(jnp.bfloat16)      # (TB, 10)

    h1 = (jnp.dot(kp,   w1k_ref[...], preferred_element_type=jnp.float32)
          + jnp.dot(beta, w1b_ref[...], preferred_element_type=jnp.float32)
          + b1_ref[...])
    h1 = jnp.maximum(h1, 0.0)

    h2 = jnp.dot(h1.astype(jnp.bfloat16), w2_ref[...],
                 preferred_element_type=jnp.float32) + b2_ref[...]
    h2 = jnp.maximum(h2, 0.0)

    out = jnp.dot(h2.astype(jnp.bfloat16), w3_ref[...],
                  preferred_element_type=jnp.float32) + b3_ref[...]   # (TB, 128) f32

    # Single lane-dense bf16 output slab; expr/jaw sliced out in the wrapper.
    out_bf16 = out.astype(jnp.bfloat16)
    out_ref[...] = out_bf16

    # pose_pred = pose.clone(); pose_pred[:, 63:66] = jaw_pose_pred
    # Jaw columns are lane-aligned (63:66 in both source and destination), so
    # this is a plain full-tile copy plus one 3-lane masked store (no XLU).
    pose_out_ref[...] = pose_ref[...]
    pose_out_ref[:, JAW_COL:JAW_COL + JAW_DIM] = (
        out_bf16[:, JAW_COL:JAW_COL + JAW_DIM].astype(pose_out_ref.dtype))


def runner_mouth_forward(keypoints, beta, pose, params):
    """Pallas implementation of RunnerMouth.forward.

    keypoints: (B, NUM_KPTS, KPT_DIM) f32
    beta:      (B, NUM_BETAS)         f32
    pose:      (B, POSE_DIM)          f32
    Returns dict with expression_pred (B, NUM_EXPR), jaw_pose_pred (B, JAW_DIM),
    pose_pred (B, POSE_DIM).
    """
    B = keypoints.shape[0]
    kp_flat = keypoints.reshape(B, KP_FLAT).astype(jnp.float32)
    beta = beta.astype(jnp.float32)
    pose = pose.astype(jnp.float32)

    # Batch tiling:
    #  * B <= 8: one full-batch tile (block == array dims).
    #  * B >  8: at least 2 grid steps (so v7x's two TensorCores both get work),
    #    tiles rounded to 16 rows and capped at TB_CAP for VMEM.
    if B <= 8:
        TB = B
    else:
        TB = min(TB_CAP, _round_up(pl.cdiv(B, 2), 16))
    grid = (pl.cdiv(B, TB),)

    def batch_map(i):
        return (i, 0)

    def weight_map(i):
        return (0, 0)

    # Deeper buffering for the streamed (per-batch) operands only; weights are
    # VMEM-resident (constant index_map) so extra buffers there waste VMEM.
    stream = {"pipeline_mode": pl.Buffered(3)} if grid[0] > 2 else {}

    out_slab, pose_pred = pl.pallas_call(
        _predictor_kernel,
        out_shape=(
            jax.ShapeDtypeStruct((B, OUT_PAD), jnp.bfloat16),
            jax.ShapeDtypeStruct((B, POSE_DIM), jnp.float32),
        ),
        grid=grid,
        in_specs=[
            pl.BlockSpec((TB, KP_FLAT), batch_map, **stream),    # keypoints (flat)
            pl.BlockSpec((TB, NUM_BETAS), batch_map, **stream),  # beta
            pl.BlockSpec((TB, POSE_DIM), batch_map, **stream),   # pose
            pl.BlockSpec((KP_FLAT, HIDDEN), weight_map),         # w1_kp   (bf16)
            pl.BlockSpec((NUM_BETAS, HIDDEN), weight_map),       # w1_beta (bf16)
            pl.BlockSpec((1, HIDDEN), weight_map),               # b1      (f32)
            pl.BlockSpec((HIDDEN, HIDDEN), weight_map),          # w2      (bf16)
            pl.BlockSpec((1, HIDDEN), weight_map),               # b2      (f32)
            pl.BlockSpec((HIDDEN, OUT_PAD), weight_map),         # w3      (bf16, padded)
            pl.BlockSpec((1, OUT_PAD), weight_map),              # b3      (f32, padded)
        ],
        out_specs=(
            pl.BlockSpec((TB, OUT_PAD), batch_map),
            pl.BlockSpec((TB, POSE_DIM), batch_map),
        ),
        compiler_params=pltpu.CompilerParams(
            dimension_semantics=("parallel",),
            vmem_limit_bytes=48 * 1024 * 1024,
        ),
    )(kp_flat, beta, pose,
      params["w1_kp"], params["w1_beta"], params["b1"],
      params["w2"], params["b2"],
      params["w3"], params["b3"])

    return {
        "expression_pred": out_slab[:, :NUM_EXPR].astype(jnp.float32),
        "jaw_pose_pred": out_slab[:, JAW_COL:JAW_COL + JAW_DIM].astype(jnp.float32),
        "pose_pred": pose_pred,
    }


def init_params(key):
    """Deterministic synthetic predictor weights (no checkpoint loading).

    Weights are stored in bf16 (MXU-native); biases stay f32.  W3/b3 are
    zero-padded to OUT_PAD=128 columns with expression weights in columns
    0:10 and jaw weights in columns 63:66 so the in-kernel jaw->pose scatter
    is lane-aligned.
    """
    k1, k2, k3 = jax.random.split(key, 3)
    in_dim = KP_FLAT + NUM_BETAS
    s1 = 1.0 / jnp.sqrt(in_dim)
    s2 = 1.0 / jnp.sqrt(HIDDEN)

    w1_full = jax.random.normal(k1, (in_dim, HIDDEN), jnp.float32) * s1
    w3_real = jax.random.normal(k3, (HIDDEN, NUM_EXPR + JAW_DIM), jnp.float32) * s2
    w3_pad = jnp.zeros((HIDDEN, OUT_PAD), jnp.float32)
    w3_pad = w3_pad.at[:, :NUM_EXPR].set(w3_real[:, :NUM_EXPR])
    w3_pad = w3_pad.at[:, JAW_COL:JAW_COL + JAW_DIM].set(w3_real[:, NUM_EXPR:])

    return {
        "w1_kp":  w1_full[:KP_FLAT].astype(jnp.bfloat16),
        "w1_beta": w1_full[KP_FLAT:].astype(jnp.bfloat16),
        "b1": jnp.zeros((1, HIDDEN), jnp.float32),
        "w2": (jax.random.normal(k2, (HIDDEN, HIDDEN), jnp.float32) * s2
               ).astype(jnp.bfloat16),
        "b2": jnp.zeros((1, HIDDEN), jnp.float32),
        "w3": w3_pad.astype(jnp.bfloat16),
        "b3": jnp.zeros((1, OUT_PAD), jnp.float32),
    }


# TODO(synk): SMPLX inference, rendering, the loss criteria and the training
# loop (run_epoch) are framework glue outside forward() and are not translated.

if __name__ == "__main__":
    key = jax.random.PRNGKey(0)
    k_kpt, k_beta, k_pose, k_param = jax.random.split(key, 4)

    keypoints = jax.random.normal(k_kpt, (BATCH, NUM_KPTS, KPT_DIM), jnp.float32)
    beta = jax.random.normal(k_beta, (BATCH, NUM_BETAS), jnp.float32)
    pose = jax.random.normal(k_pose, (BATCH, POSE_DIM), jnp.float32)
    params = init_params(k_param)

    out = runner_mouth_forward(keypoints, beta, pose, params)
    jax.block_until_ready(out)

    # Plain-JAX reference using identical bf16-operand / f32-accumulate math,
    # including the bf16 rounding of the output slab.
    kp_flat = keypoints.reshape(BATCH, KP_FLAT)
    h1 = jnp.maximum(
        jnp.dot(kp_flat.astype(jnp.bfloat16), params["w1_kp"],
                preferred_element_type=jnp.float32)
        + jnp.dot(beta.astype(jnp.bfloat16), params["w1_beta"],
                  preferred_element_type=jnp.float32)
        + params["b1"], 0.0)
    h2 = jnp.maximum(
        jnp.dot(h1.astype(jnp.bfloat16), params["w2"],
                preferred_element_type=jnp.float32) + params["b2"], 0.0)
    o = (jnp.dot(h2.astype(jnp.bfloat16), params["w3"],
                 preferred_element_type=jnp.float32) + params["b3"])
    o_bf16 = o.astype(jnp.bfloat16)
    expr_ref = o_bf16[:, :NUM_EXPR].astype(jnp.float32)
    jaw_ref = o_bf16[:, JAW_COL:JAW_COL + JAW_DIM].astype(jnp.float32)
    pose_ref = pose.at[:, 63:66].set(jaw_ref)

    assert jnp.allclose(out["expression_pred"], expr_ref, atol=2e-3)
    assert jnp.allclose(out["jaw_pose_pred"], jaw_ref, atol=2e-3)
    assert jnp.allclose(out["pose_pred"], pose_ref, atol=2e-3)
    # Module invariant: jaw_pose_pred == pose_pred[:, 63:66] exactly.
    assert jnp.array_equal(out["jaw_pose_pred"], out["pose_pred"][:, 63:66])

    print("KERNEL_OK")
</pallas_src>

<mosaic_0001>
module attributes {stable_mosaic.version = 11 : i64} {
  func.func @_predictor_kernel(%arg0: i32, %arg1: memref<2x204xf32, #tpu.memory_space<vmem>>, %arg2: memref<2x10xf32, #tpu.memory_space<vmem>>, %arg3: memref<2x165xf32, #tpu.memory_space<vmem>>, %arg4: memref<204x256xbf16, #tpu.memory_space<vmem>>, %arg5: memref<10x256xbf16, #tpu.memory_space<vmem>>, %arg6: memref<1x256xf32, #tpu.memory_space<vmem>>, %arg7: memref<256x256xbf16, #tpu.memory_space<vmem>>, %arg8: memref<1x256xf32, #tpu.memory_space<vmem>>, %arg9: memref<256x128xbf16, #tpu.memory_space<vmem>>, %arg10: memref<1x128xf32, #tpu.memory_space<vmem>>, %arg11: memref<2x128xbf16, #tpu.memory_space<vmem>>, %arg12: memref<2x165xf32, #tpu.memory_space<vmem>>) attributes {dimension_semantics = [#tpu.dimension_semantics<parallel>], iteration_bounds = array<i64: 1>, scalar_prefetch = 0 : i64, scratch_operands = 0 : i64, tpu.core_type = #tpu.core_type<tc>, window_params = [{transform_indices = @transform_0, window_bounds = array<i64: 2, 204>}, {transform_indices = @transform_1, window_bounds = array<i64: 2, 10>}, {transform_indices = @transform_2, window_bounds = array<i64: 2, 165>}, {pipeline_mode = #tpu.pipeline_mode<synchronous>, transform_indices = @transform_3, window_bounds = array<i64: 204, 256>}, {pipeline_mode = #tpu.pipeline_mode<synchronous>, transform_indices = @transform_4, window_bounds = array<i64: 10, 256>}, {pipeline_mode = #tpu.pipeline_mode<synchronous>, transform_indices = @transform_5, window_bounds = array<i64: 1, 256>}, {pipeline_mode = #tpu.pipeline_mode<synchronous>, transform_indices = @transform_6, window_bounds = array<i64: 256, 256>}, {pipeline_mode = #tpu.pipeline_mode<synchronous>, transform_indices = @transform_7, window_bounds = array<i64: 1, 256>}, {pipeline_mode = #tpu.pipeline_mode<synchronous>, transform_indices = @transform_8, window_bounds = array<i64: 256, 128>}, {pipeline_mode = #tpu.pipeline_mode<synchronous>, transform_indices = @transform_9, window_bounds = array<i64: 1, 128>}, {transform_indices = @transform_10, window_bounds = array<i64: 2, 128>}, {transform_indices = @transform_11, window_bounds = array<i64: 2, 165>}]} {
    %c0 = arith.constant 0 : index
    %c0_0 = arith.constant 0 : index
    %0 = vector.load %arg1[%c0, %c0_0] : memref<2x204xf32, #tpu.memory_space<vmem>>, vector<2x204xf32>
    %1 = arith.truncf %0 : vector<2x204xf32> to vector<2x204xbf16>
    %c0_1 = arith.constant 0 : index
    %c0_2 = arith.constant 0 : index
    %2 = vector.load %arg2[%c0_1, %c0_2] : memref<2x10xf32, #tpu.memory_space<vmem>>, vector<2x10xf32>
    %3 = arith.truncf %2 : vector<2x10xf32> to vector<2x10xbf16>
    %c0_3 = arith.constant 0 : index
    %c0_4 = arith.constant 0 : index
    %4 = vector.load %arg4[%c0_3, %c0_4] : memref<204x256xbf16, #tpu.memory_space<vmem>>, vector<204x256xbf16>
    %cst = arith.constant dense<0.000000e+00> : vector<2x256xf32>
    %5 = tpu.matmul %1, %4, %cst {dimension_numbers = #tpu.dot_dimension_numbers<[1], [0], [0], [1], [0, 0, 1, 1], [], []>} : vector<2x204xbf16>, vector<204x256xbf16>, vector<2x256xf32> -> vector<2x256xf32>
    %c0_5 = arith.constant 0 : index
    %c0_6 = arith.constant 0 : index
    %6 = vector.load %arg5[%c0_5, %c0_6] : memref<10x256xbf16, #tpu.memory_space<vmem>>, vector<10x256xbf16>
    %cst_7 = arith.constant dense<0.000000e+00> : vector<2x256xf32>
    %7 = tpu.matmul %3, %6, %cst_7 {dimension_numbers = #tpu.dot_dimension_numbers<[1], [0], [0], [1], [0, 0, 1, 1], [], []>} : vector<2x10xbf16>, vector<10x256xbf16>, vector<2x256xf32> -> vector<2x256xf32>
    %8 = arith.addf %5, %7 : vector<2x256xf32>
    %c0_8 = arith.constant 0 : index
    %c0_9 = arith.constant 0 : index
    %9 = vector.load %arg6[%c0_8, %c0_9] : memref<1x256xf32, #tpu.memory_space<vmem>>, vector<1x256xf32>
    %10 = vector.broadcast %9 : vector<1x256xf32> to vector<2x256xf32>
    %11 = arith.addf %8, %10 : vector<2x256xf32>
    %cst_10 = arith.constant 0.000000e+00 : f32
    %12 = vector.broadcast %cst_10 : f32 to vector<2x256xf32>
    %13 = arith.maximumf %11, %12 : vector<2x256xf32>
    %14 = arith.truncf %13 : vector<2x256xf32> to vector<2x256xbf16>
    %c0_11 = arith.constant 0 : index
    %c0_12 = arith.constant 0 : index
    %15 = vector.load %arg7[%c0_11, %c0_12] : memref<256x256xbf16, #tpu.memory_space<vmem>>, vector<256x256xbf16>
    %cst_13 = arith.constant dense<0.000000e+00> : vector<2x256xf32>
    %16 = tpu.matmul %14, %15, %cst_13 {dimension_numbers = #tpu.dot_dimension_numbers<[1], [0], [0], [1], [0, 0, 1, 1], [], []>} : vector<2x256xbf16>, vector<256x256xbf16>, vector<2x256xf32> -> vector<2x256xf32>
    %c0_14 = arith.constant 0 : index
    %c0_15 = arith.constant 0 : index
    %17 = vector.load %arg8[%c0_14, %c0_15] : memref<1x256xf32, #tpu.memory_space<vmem>>, vector<1x256xf32>
    %18 = vector.broadcast %17 : vector<1x256xf32> to vector<2x256xf32>
    %19 = arith.addf %16, %18 : vector<2x256xf32>
    %cst_16 = arith.constant 0.000000e+00 : f32
    %20 = vector.broadcast %cst_16 : f32 to vector<2x256xf32>
    %21 = arith.maximumf %19, %20 : vector<2x256xf32>
    %22 = arith.truncf %21 : vector<2x256xf32> to vector<2x256xbf16>
    %c0_17 = arith.constant 0 : index
    %c0_18 = arith.constant 0 : index
    %23 = vector.load %arg9[%c0_17, %c0_18] : memref<256x128xbf16, #tpu.memory_space<vmem>>, vector<256x128xbf16>
    %cst_19 = arith.constant dense<0.000000e+00> : vector<2x128xf32>
    %24 = tpu.matmul %22, %23, %cst_19 {dimension_numbers = #tpu.dot_dimension_numbers<[1], [0], [0], [1], [0, 0, 1, 1], [], []>} : vector<2x256xbf16>, vector<256x128xbf16>, vector<2x128xf32> -> vector<2x128xf32>
    %c0_20 = arith.constant 0 : index
    %c0_21 = arith.constant 0 : index
    %25 = vector.load %arg10[%c0_20, %c0_21] : memref<1x128xf32, #tpu.memory_space<vmem>>, vector<1x128xf32>
    %26 = vector.broadcast %25 : vector<1x128xf32> to vector<2x128xf32>
    %27 = arith.addf %24, %26 : vector<2x128xf32>
    %28 = arith.truncf %27 : vector<2x128xf32> to vector<2x128xbf16>
    %c0_22 = arith.constant 0 : index
    %c0_23 = arith.constant 0 : index
    %29 = vector.load %arg11[%c0_22, %c0_23] : memref<2x128xbf16, #tpu.memory_space<vmem>>, vector<2x128xbf16>
    tpu.vector_store %arg11[%c0_22, %c0_23], %28 {strides = array<i32>} : memref<2x128xbf16, #tpu.memory_space<vmem>>, vector<2x128xbf16>,
    %c0_24 = arith.constant 0 : index
    %c0_25 = arith.constant 0 : index
    %30 = vector.load %arg3[%c0_24, %c0_25] : memref<2x165xf32, #tpu.memory_space<vmem>>, vector<2x165xf32>
    %c0_26 = arith.constant 0 : index
    %c0_27 = arith.constant 0 : index
    %31 = vector.load %arg12[%c0_26, %c0_27] : memref<2x165xf32, #tpu.memory_space<vmem>>, vector<2x165xf32>
    tpu.vector_store %arg12[%c0_26, %c0_27], %30 {strides = array<i32>} : memref<2x165xf32, #tpu.memory_space<vmem>>, vector<2x165xf32>,
    %32 = vector.extract_strided_slice %28 {offsets = [0, 63], sizes = [2, 3], strides = [1, 1]} : vector<2x128xbf16> to vector<2x3xbf16>
    %33 = arith.extf %32 : vector<2x3xbf16> to vector<2x3xf32>
    %c0_28 = arith.constant 0 : index
    %c63 = arith.constant 63 : index
    %34 = vector.load %arg12[%c0_28, %c63] : memref<2x165xf32, #tpu.memory_space<vmem>>, vector<2x3xf32>
    tpu.vector_store %arg12[%c0_28, %c63], %33 {strides = array<i32>} : memref<2x165xf32, #tpu.memory_space<vmem>>, vector<2x3xf32>,
    return
  }
  func.func @transform_0(%arg0: i32) -> (i32, i32) {
    %c0_i32 = arith.constant 0 : i32
    %c0_i32_0 = arith.constant 0 : i32
    return %arg0, %c0_i32 : i32, i32
  }
  func.func @transform_1(%arg0: i32) -> (i32, i32) {
    %c0_i32 = arith.constant 0 : i32
    %c0_i32_0 = arith.constant 0 : i32
    return %arg0, %c0_i32 : i32, i32
  }
  func.func @transform_2(%arg0: i32) -> (i32, i32) {
    %c0_i32 = arith.constant 0 : i32
    %c0_i32_0 = arith.constant 0 : i32
    return %arg0, %c0_i32 : i32, i32
  }
  func.func @transform_3(%arg0: i32) -> (i32, i32) {
    %c0_i32 = arith.constant 0 : i32
    %c0_i32_0 = arith.constant 0 : i32
    %c0_i32_1 = arith.constant 0 : i32
    return %c0_i32, %c0_i32_0 : i32, i32
  }
  func.func @transform_4(%arg0: i32) -> (i32, i32) {
    %c0_i32 = arith.constant 0 : i32
    %c0_i32_0 = arith.constant 0 : i32
    %c0_i32_1 = arith.constant 0 : i32
    return %c0_i32, %c0_i32_0 : i32, i32
  }
  func.func @transform_5(%arg0: i32) -> (i32, i32) {
    %c0_i32 = arith.constant 0 : i32
    %c0_i32_0 = arith.constant 0 : i32
    %c0_i32_1 = arith.constant 0 : i32
    return %c0_i32, %c0_i32_0 : i32, i32
  }
  func.func @transform_6(%arg0: i32) -> (i32, i32) {
    %c0_i32 = arith.constant 0 : i32
    %c0_i32_0 = arith.constant 0 : i32
    %c0_i32_1 = arith.constant 0 : i32
    return %c0_i32, %c0_i32_0 : i32, i32
  }
  func.func @transform_7(%arg0: i32) -> (i32, i32) {
    %c0_i32 = arith.constant 0 : i32
    %c0_i32_0 = arith.constant 0 : i32
    %c0_i32_1 = arith.constant 0 : i32
    return %c0_i32, %c0_i32_0 : i32, i32
  }
  func.func @transform_8(%arg0: i32) -> (i32, i32) {
    %c0_i32 = arith.constant 0 : i32
    %c0_i32_0 = arith.constant 0 : i32
    %c0_i32_1 = arith.constant 0 : i32
    return %c0_i32, %c0_i32_0 : i32, i32
  }
  func.func @transform_9(%arg0: i32) -> (i32, i32) {
    %c0_i32 = arith.constant 0 : i32
    %c0_i32_0 = arith.constant 0 : i32
    %c0_i32_1 = arith.constant 0 : i32
    return %c0_i32, %c0_i32_0 : i32, i32
  }
  func.func @transform_10(%arg0: i32) -> (i32, i32) {
    %c0_i32 = arith.constant 0 : i32
    %c0_i32_0 = arith.constant 0 : i32
    return %arg0, %c0_i32 : i32, i32
  }
  func.func @transform_11(%arg0: i32) -> (i32, i32) {
    %c0_i32 = arith.constant 0 : i32
    %c0_i32_0 = arith.constant 0 : i32
    return %arg0, %c0_i32 : i32, i32
  }
}

</mosaic_0001>

<llo_original>
// kernel: tpu_custom_call.1
$region0: #{tpu_custom_call.1}
  #allocation0 [shape = 'u32[]', space=smem, size = 0x4, offset = 0x4, fixed_abs, tag = 'smem constant byte address 0x4 - core index']
  #allocation1 [shape = 'u32[144,128]{1,0:T(1,128)}', space=vmem, size = 0x12000, scoped, tag = 'internal scratch']
  %s0 = inlined_call_operand.hbm [shape: f32[2,204], index: 0, kind: input, shape index: {}]
  %s1 = inlined_call_operand.vmem [shape: f32[2,10], index: 1, kind: input, shape index: {}]
  %s2 = inlined_call_operand.vmem [shape: f32[2,165], index: 2, kind: input, shape index: {}]
  %s3 = inlined_call_operand.hbm [shape: bf16[204,256], index: 3, kind: input, shape index: {}]
  %s4 = inlined_call_operand.hbm [shape: bf16[10,256], index: 4, kind: input, shape index: {}]
  %s5 = inlined_call_operand.vmem [shape: f32[1,256], index: 5, kind: input, shape index: {}]
  %s6 = inlined_call_operand.hbm [shape: bf16[256,256], index: 6, kind: input, shape index: {}]
  %s7 = inlined_call_operand.vmem [shape: f32[1,256], index: 7, kind: input, shape index: {}]
  %s8 = inlined_call_operand.hbm [shape: bf16[256,128], index: 8, kind: input, shape index: {}]
  %s9 = inlined_call_operand.vmem [shape: f32[1,128], index: 9, kind: input, shape index: {}]
  %s10 = inlined_call_operand.hbm [shape: bf16[2,128], index: 10, kind: output, shape index: {0}]
  %s11 = inlined_call_operand.hbm [shape: f32[2,165], index: 11, kind: output, shape index: {1}]
  %12 = xla_tuple %s10, %s11
  %s13 = sld [smem:[#allocation0]]
  $region78: #{tpu_custom_call.1} parent=0
    _
  %s15 = ssub.s32 1, %s13
  %s16 = scalar_select 0, %s15, %s13
  $region1: #{tpu_custom_call.1} parent=0
    #allocation2 [shape = 'u8[2048]{0}', space=vmem, size = 0x800, scoped, tag = 'input window, operand 0, single buffered']
    #allocation3 [shape = 's32[1]{0}', space=sflag, size = 0x4, scoped, tag = 'scoped memory for tpu_custom_call.1']
    #allocation4 [shape = 's32[1]{0}', space=sflag, size = 0x4, scoped, tag = 'scoped memory for tpu_custom_call.1']
    #allocation5 [shape = 'u8[106496]{0}', space=vmem, size = 0x1a000, scoped, tag = 'input window, operand 3, single buffered']
    #allocation6 [shape = 's32[1]{0}', space=sflag, size = 0x4, scoped, tag = 'scoped memory for tpu_custom_call.1']
    #allocation7 [shape = 'u8[8192]{0}', space=vmem, size = 0x2000, scoped, tag = 'input window, operand 4, single buffered']
    #allocation8 [shape = 'u8[131072]{0}', space=vmem, size = 0x20000, scoped, tag = 'input window, operand 6, single buffered']
    #allocation9 [shape = 's32[1]{0}', space=sflag, size = 0x4, scoped, tag = 'scoped memory for tpu_custom_call.1']
    #allocation10 [shape = 'u8[65536]{0}', space=vmem, size = 0x10000, scoped, tag = 'input window, operand 8, single buffered']
    #allocation11 [shape = 'u8[512]{0}', space=vmem, size = 0x400, scoped, tag = 'output window, operand 0, single buffered']
    #allocation12 [shape = 'u8[2048]{0}', space=vmem, size = 0x800, scoped, tag = 'output window, operand 1, single buffered']
    #allocation13 [shape = 's32[1]{0}', space=sflag, size = 0x4, scoped, tag = 'scoped memory for tpu_custom_call.1']
    %17 = vsyncpa [#allocation3], 0
    %18 = vsyncpa [#allocation6], 0
    %19 = vsyncpa [#allocation9], 0
    %20 = vsyncpa [#allocation4], 0
    %21 = vsyncpa [#allocation13], 0
    // Predicated region
    $region2: #{tpu_custom_call.1} parent=1 // pred_check
      _
    $region3: #{tpu_custom_call.1} parent=1 // pred_check_branch
      %23 = sbr.rel (0) target = $region5
    $region4: #{tpu_custom_call.1} parent=1 // pred_region
      %s25 = ssub.s32 64, 64
      %26 = vsyncadd [#allocation3], %s25
      %s28 = sshll.u32 [#allocation2], 4
      %s29 = int_to_ptr.vmem [resolvable:$true] %s28
      %31 = dma.hbm_to_vmem [thread:$0]  %s0, 64, %s29, [#allocation3]
    $region5: #{tpu_custom_call.1} parent=1 // pred_fallthru
      _
    // Predicated region
    $region6: #{tpu_custom_call.1} parent=1 // pred_check
      _
    $region7: #{tpu_custom_call.1} parent=1 // pred_check_branch
      %33 = sbr.rel (0) target = $region9
    $region8: #{tpu_custom_call.1} parent=1 // pred_region
      _
    $region9: #{tpu_custom_call.1} parent=1 // pred_fallthru
      _
    // Predicated region
    $region10: #{tpu_custom_call.1} parent=1 // pred_check
      _
    $region11: #{tpu_custom_call.1} parent=1 // pred_check_branch
      %35 = sbr.rel (0) target = $region13
    $region12: #{tpu_custom_call.1} parent=1 // pred_region
      _
    $region13: #{tpu_custom_call.1} parent=1 // pred_fallthru
      _
    // Predicated region
    $region14: #{tpu_custom_call.1} parent=1 // pred_check
      _
    $region15: #{tpu_custom_call.1} parent=1 // pred_check_branch
      %37 = sbr.rel (0) target = $region17
    $region16: #{tpu_custom_call.1} parent=1 // pred_region
      %s39 = ssub.s32 3328, 3328
      %40 = vsyncadd [#allocation6], %s39
      %s41 = sshll.u32 [#allocation5], 4
      %s42 = int_to_ptr.vmem [resolvable:$true] %s41
      %47 = dma.hbm_to_vmem [thread:$0]  %s3, 3328, %s42, [#allocation6], 128, 128, 8
    $region17: #{tpu_custom_call.1} parent=1 // pred_fallthru
      _
    // Predicated region
    $region18: #{tpu_custom_call.1} parent=1 // pred_check
      _
    $region19: #{tpu_custom_call.1} parent=1 // pred_check_branch
      %49 = sbr.rel (0) target = $region21
    $region20: #{tpu_custom_call.1} parent=1 // pred_region
      %s51 = ssub.s32 256, 256
      %52 = vsyncadd [#allocation6], %s51
      %s53 = sshll.u32 [#allocation7], 4
      %s54 = int_to_ptr.vmem [resolvable:$true] %s53
      %59 = dma.hbm_to_vmem [thread:$0]  %s4, 256, %s54, [#allocation6], 128, 128, 8
    $region21: #{tpu_custom_call.1} parent=1 // pred_fallthru
      _
    // Predicated region
    $region22: #{tpu_custom_call.1} parent=1 // pred_check
      _
    $region23: #{tpu_custom_call.1} parent=1 // pred_check_branch
      %61 = sbr.rel (0) target = $region25
    $region24: #{tpu_custom_call.1} parent=1 // pred_region
      _
    $region25: #{tpu_custom_call.1} parent=1 // pred_fallthru
      _
    // Predicated region
    $region26: #{tpu_custom_call.1} parent=1 // pred_check
      _
    $region27: #{tpu_custom_call.1} parent=1 // pred_check_branch
      %63 = sbr.rel (0) target = $region29
    $region28: #{tpu_custom_call.1} parent=1 // pred_region
      %s65 = ssub.s32 4096, 4096
      %66 = vsyncadd [#allocation9], %s65
      %s67 = sshll.u32 [#allocation8], 4
      %s68 = int_to_ptr.vmem [resolvable:$true] %s67
      %73 = dma.hbm_to_vmem [thread:$0]  %s6, 4096, %s68, [#allocation9], 128, 128, 8
    $region29: #{tpu_custom_call.1} parent=1 // pred_fallthru
      _
    // Predicated region
    $region30: #{tpu_custom_call.1} parent=1 // pred_check
      _
    $region31: #{tpu_custom_call.1} parent=1 // pred_check_branch
      %75 = sbr.rel (0) target = $region33
    $region32: #{tpu_custom_call.1} parent=1 // pred_region
      _
    $region33: #{tpu_custom_call.1} parent=1 // pred_fallthru
      _
    // Predicated region
    $region34: #{tpu_custom_call.1} parent=1 // pred_check
      _
    $region35: #{tpu_custom_call.1} parent=1 // pred_check_branch
      %77 = sbr.rel (0) target = $region37
    $region36: #{tpu_custom_call.1} parent=1 // pred_region
      %s79 = ssub.s32 2048, 2048
      %80 = vsyncadd [#allocation9], %s79
      %s81 = sshll.u32 [#allocation10], 4
      %s82 = int_to_ptr.vmem [resolvable:$true] %s81
      %87 = dma.hbm_to_vmem [thread:$0]  %s8, 2048, %s82, [#allocation9], 64, 64, 4
    $region37: #{tpu_custom_call.1} parent=1 // pred_fallthru
      _
    // Predicated region
    $region38: #{tpu_custom_call.1} parent=1 // pred_check
      _
    $region39: #{tpu_custom_call.1} parent=1 // pred_check_branch
      %89 = sbr.rel (0) target = $region41
    $region40: #{tpu_custom_call.1} parent=1 // pred_region
      _
    $region41: #{tpu_custom_call.1} parent=1 // pred_fallthru
      _
    // Predicated region
    $region42: #{tpu_custom_call.1} parent=1 // pred_check
      _
    $region43: #{tpu_custom_call.1} parent=1 // pred_check_branch
      %91 = sbr.rel (0) target = $region45
    $region44: #{tpu_custom_call.1} parent=1 // pred_region
      %92 = dma.done [#allocation3], 64
    $region45: #{tpu_custom_call.1} parent=1 // pred_fallthru
      _
    // Predicated region
    $region46: #{tpu_custom_call.1} parent=1 // pred_check
      _
    $region47: #{tpu_custom_call.1} parent=1 // pred_check_branch
      %94 = sbr.rel (0) target = $region49
    $region48: #{tpu_custom_call.1} parent=1 // pred_region
      %95 = dma.done [#allocation6], 3328
    $region49: #{tpu_custom_call.1} parent=1 // pred_fallthru
      _
    // Predicated region
    $region50: #{tpu_custom_call.1} parent=1 // pred_check
      _
    $region51: #{tpu_custom_call.1} parent=1 // pred_check_branch
      %97 = sbr.rel (0) target = $region53
    $region52: #{tpu_custom_call.1} parent=1 // pred_region
      %98 = dma.done [#allocation6], 256
    $region53: #{tpu_custom_call.1} parent=1 // pred_fallthru
      _
    // Predicated region
    $region54: #{tpu_custom_call.1} parent=1 // pred_check
      _
    $region55: #{tpu_custom_call.1} parent=1 // pred_check_branch
      %100 = sbr.rel (0) target = $region57
    $region56: #{tpu_custom_call.1} parent=1 // pred_region
      %101 = dma.done [#allocation9], 4096
    $region57: #{tpu_custom_call.1} parent=1 // pred_fallthru
      _
    // Predicated region
    $region58: #{tpu_custom_call.1} parent=1 // pred_check
      _
    $region59: #{tpu_custom_call.1} parent=1 // pred_check_branch
      %103 = sbr.rel (0) target = $region61
    $region60: #{tpu_custom_call.1} parent=1 // pred_region
      %104 = dma.done [#allocation9], 2048
    $region61: #{tpu_custom_call.1} parent=1 // pred_fallthru
      _
    %v106 = vld [vmem:[#allocation2] sm:$0xf]
    %v109 = vunpack.c.l.s4 1983009808
    %v110 = vunpack.c.0.s8 %v109
    %v111 = vlaneseq
    %v112 = vshrl.u32 %v111, 7
    %v113 = vsub.s32 %v110, %v112
    %v114 = vrot.slane %v106, %v113
    %v115 = vcombine.high %v114, %v114
    %v118 = vpack.c.bf16 %v114, %v114
    %v119 = vpack.c.bf16 %v115, %v115
    %v120 = vld [vmem:[%s1] sm:$0x3]
    %v121 = vpack.c.bf16 %v120, %v120
    %v122 = vld [vmem:[#allocation5] sm:$0xff]
    %v123 = vld [vmem:[#allocation5 + $0x8] sm:$0xff]
    %v124 = vld [vmem:[#allocation5 + $0x10] sm:$0xff]
    %v125 = vld [vmem:[#allocation5 + $0x18] sm:$0xff]
    %v126 = vld [vmem:[#allocation5 + $0x20] sm:$0xff]
    %v127 = vld [vmem:[#allocation5 + $0x28] sm:$0xff]
    %v128 = vld [vmem:[#allocation5 + $0x30] sm:$0xff]
    %v129 = vld [vmem:[#allocation5 + $0x38] sm:$0xff]
    %v130 = vld [vmem:[#allocation5 + $0x40] sm:$0xff]
    %v131 = vld [vmem:[#allocation5 + $0x48] sm:$0xff]
    %v132 = vld [vmem:[#allocation5 + $0x50] sm:$0xff]
    %v133 = vld [vmem:[#allocation5 + $0x58] sm:$0xff]
    %v134 = vld [vmem:[#allocation5 + $0x60] sm:$0xff]
    %v135 = vld [vmem:[#allocation5 + $0x68] sm:$0xff]
    %v136 = vld [vmem:[#allocation5 + $0x70] sm:$0xff]
    %v137 = vld [vmem:[#allocation5 + $0x78] sm:$0xff]
    %v138 = vld [vmem:[#allocation5 + $0x80] sm:$0xff]
    %v139 = vld [vmem:[#allocation5 + $0x88] sm:$0xff]
    %v140 = vld [vmem:[#allocation5 + $0x90] sm:$0xff]
    %v141 = vld [vmem:[#allocation5 + $0x98] sm:$0xff]
    %v142 = vld [vmem:[#allocation5 + $0xa0] sm:$0xff]
    %v143 = vld [vmem:[#allocation5 + $0xa8] sm:$0xff]
    %v144 = vld [vmem:[#allocation5 + $0xb0] sm:$0xff]
    %v145 = vld [vmem:[#allocation5 + $0xb8] sm:$0xff]
    %v146 = vld [vmem:[#allocation5 + $0xc0] sm:$0xff]
    %v147 = vld [vmem:[#allocation5 + $0xc8] sm:$0x33]
    %v148 = vld [vmem:[#allocation7] sm:$0xff]
    %v149 = vld [vmem:[#allocation7 + $0x8] sm:$0x11]
    %v152 = vunpack.c.l.b16 %v148
    %v153 = vunpack.c.h.b16 %v148
    %v154 = vunpack.c.l.b16 %v149
    %v155 = vunpack.c.h.b16 %v149
    %v156 = vpack.c.b16 %v154, %v152
    %v157 = vpack.c.b16 %v155, %v153
    %vm158 = vcmask 80896
    %v160 = vsel %vm158, %v121, 0
    %vm162 = vcmask 1044480
    %v164 = vsel %vm162, %v156, 0
    %v167 = vsel %vm162, %v157, 0
    %169 = vmatprep.subr.bf16.mxu0 %v167
    %170 = vmatpush1.bf16.msra.mxu0 %v164
    %171 = vmatprep.subr.bf16.mxu0 0
    %172 = vmatpush1.bf16.msra.mxu0 0
    %173 = vmatprep.subr.bf16.mxu0 0
    %174 = vmatpush1.bf16.msra.mxu0 0
    %175 = vmatprep.subr.bf16.mxu0 0
    %176 = vmatpush1.bf16.msra.mxu0 0
    %177 = vmatprep.subr.bf16.mxu0 0
    %178 = vmatpush1.bf16.msra.mxu0 0
    %179 = vmatprep.subr.bf16.mxu0 0
    %180 = vmatpush1.bf16.msra.mxu0 0
    %181 = vmatprep.subr.bf16.mxu0 0
    %182 = vmatpush1.bf16.msra.mxu0 0
    %183 = vmatprep.subr.bf16.mxu0 0
    %184 = vmatpush1.bf16.msra.mxu0 0
    %185 = vmatprep.subr.bf16.mxu0 0
    %186 = vmatpush1.bf16.msra.mxu0 0
    %187 = vmatprep.subr.bf16.mxu0 0
    %188 = vmatpush1.bf16.msra.mxu0 0
    %189 = vmatprep.subr.bf16.mxu0 0
    %190 = vmatpush1.bf16.msra.mxu0 0
    %191 = vmatprep.subr.bf16.mxu0 0
    %192 = vmatpush1.bf16.msra.mxu0 0
    %193 = vmatprep.subr.bf16.mxu0 0
    %194 = vmatpush1.bf16.msra.mxu0 0
    %195 = vmatprep.subr.bf16.mxu0 0
    %196 = vmatpush1.bf16.msra.mxu0 0
    %197 = vmatprep.subr.bf16.mxu0 0
    %198 = vmatpush1.bf16.msra.mxu0 0
    %199 = vmatprep.subr.bf16.mxu0 0
    %200 = vmatpush1.bf16.msra.mxu0 0
    %201 = vmatprep.mubr.bf16.mxu0 0
    %202 = vmatmul.mubr.bf16.gmra.mrb[0].mxu0 %v160
    %v203 = vpop.f32.mrb[0].mxu0
    %v204 = vadd.f32 0.0, %v203
    %v205 = vpop.f32.mrb[0].mxu0
    %v206 = vadd.f32 0.0, %v205
    %v207 = vpop.f32.mrb[0].mxu0
    %v208 = vpop.f32.mrb[0].mxu0
    %209 = vdwg.mxu0
    %v236 = vunpack.c.l.b16 %v122
    %v237 = vunpack.c.h.b16 %v122
    %v238 = vunpack.c.l.b16 %v123
    %v239 = vunpack.c.h.b16 %v123
    %v240 = vunpack.c.l.b16 %v124
    %v241 = vunpack.c.h.b16 %v124
    %v242 = vunpack.c.l.b16 %v125
    %v243 = vunpack.c.h.b16 %v125
    %v244 = vunpack.c.l.b16 %v126
    %v245 = vunpack.c.h.b16 %v126
    %v246 = vunpack.c.l.b16 %v127
    %v247 = vunpack.c.h.b16 %v127
    %v248 = vunpack.c.l.b16 %v128
    %v249 = vunpack.c.h.b16 %v128
    %v250 = vunpack.c.l.b16 %v129
    %v251 = vunpack.c.h.b16 %v129
    %v252 = vunpack.c.l.b16 %v130
    %v253 = vunpack.c.h.b16 %v130
    %v254 = vunpack.c.l.b16 %v131
    %v255 = vunpack.c.h.b16 %v131
    %v256 = vunpack.c.l.b16 %v132
    %v257 = vunpack.c.h.b16 %v132
    %v258 = vunpack.c.l.b16 %v133
    %v259 = vunpack.c.h.b16 %v133
    %v260 = vunpack.c.l.b16 %v134
    %v261 = vunpack.c.h.b16 %v134
    %v262 = vunpack.c.l.b16 %v135
    %v263 = vunpack.c.h.b16 %v135
    %v264 = vunpack.c.l.b16 %v136
    %v265 = vunpack.c.h.b16 %v136
    %v266 = vunpack.c.l.b16 %v137
    %v267 = vunpack.c.h.b16 %v137
    %v268 = vunpack.c.l.b16 %v138
    %v269 = vunpack.c.h.b16 %v138
    %v270 = vunpack.c.l.b16 %v139
    %v271 = vunpack.c.h.b16 %v139
    %v272 = vunpack.c.l.b16 %v140
    %v273 = vunpack.c.h.b16 %v140
    %v274 = vunpack.c.l.b16 %v141
    %v275 = vunpack.c.h.b16 %v141
    %v276 = vunpack.c.l.b16 %v142
    %v277 = vunpack.c.h.b16 %v142
    %v278 = vunpack.c.l.b16 %v143
    %v279 = vunpack.c.h.b16 %v143
    %v280 = vunpack.c.l.b16 %v144
    %v281 = vunpack.c.h.b16 %v144
    %v282 = vunpack.c.l.b16 %v145
    %v283 = vunpack.c.h.b16 %v145
    %v284 = vunpack.c.l.b16 %v146
    %v285 = vunpack.c.h.b16 %v146
    %v286 = vunpack.c.l.b16 %v147
    %v287 = vunpack.c.h.b16 %v147
    %v288 = vpack.c.b16 %v238, %v236
    %v289 = vpack.c.b16 %v239, %v237
    %v290 = vpack.c.b16 %v242, %v240
    %v291 = vpack.c.b16 %v243, %v241
    %v292 = vpack.c.b16 %v246, %v244
    %v293 = vpack.c.b16 %v247, %v245
    %v294 = vpack.c.b16 %v250, %v248
    %v295 = vpack.c.b16 %v251, %v249
    %v296 = vpack.c.b16 %v254, %v252
    %v297 = vpack.c.b16 %v255, %v253
    %v298 = vpack.c.b16 %v258, %v256
    %v299 = vpack.c.b16 %v259, %v257
    %v300 = vpack.c.b16 %v262, %v260
    %v301 = vpack.c.b16 %v263, %v261
    %v302 = vpack.c.b16 %v266, %v264
    %v303 = vpack.c.b16 %v267, %v265
    %v304 = vpack.c.b16 %v270, %v268
    %v305 = vpack.c.b16 %v271, %v269
    %v306 = vpack.c.b16 %v274, %v272
    %v307 = vpack.c.b16 %v275, %v273
    %v308 = vpack.c.b16 %v278, %v276
    %v309 = vpack.c.b16 %v279, %v277
    %v310 = vpack.c.b16 %v282, %v280
    %v311 = vpack.c.b16 %v283, %v281
    %v312 = vpack.c.b16 %v286, %v284
    %v313 = vpack.c.b16 %v287, %v285
    %vm338 = vcmask 621568
    %v340 = vsel %vm338, %v119, 0
    %vm342 = vcmask 1045504
    %v344 = vsel %vm342, %v312, 0
    %v347 = vsel %vm342, %v313, 0
    %349 = vmatprep.subr.bf16.mxu0 %v289
    %350 = vmatpush1.bf16.msra.mxu0 %v288
    %351 = vmatprep.subr.bf16.mxu0 %v291
    %352 = vmatpush1.bf16.msra.mxu0 %v290
    %353 = vmatprep.subr.bf16.mxu0 %v293
    %354 = vmatpush1.bf16.msra.mxu0 %v292
    %355 = vmatprep.subr.bf16.mxu0 %v295
    %356 = vmatpush1.bf16.msra.mxu0 %v294
    %357 = vmatprep.subr.bf16.mxu0 %v297
    %358 = vmatpush1.bf16.msra.mxu0 %v296
    %359 = vmatprep.subr.bf16.mxu0 %v299
    %360 = vmatpush1.bf16.msra.mxu0 %v298
    %361 = vmatprep.subr.bf16.mxu0 %v301
    %362 = vmatpush1.bf16.msra.mxu0 %v300
    %363 = vmatprep.subr.bf16.mxu0 %v303
    %364 = vmatpush1.bf16.msra.mxu0 %v302
    %365 = vmatprep.subr.bf16.mxu0 %v305
    %366 = vmatpush1.bf16.msra.mxu0 %v304
    %367 = vmatprep.subr.bf16.mxu0 %v307
    %368 = vmatpush1.bf16.msra.mxu0 %v306
    %369 = vmatprep.subr.bf16.mxu0 %v309
    %370 = vmatpush1.bf16.msra.mxu0 %v308
    %371 = vmatprep.subr.bf16.mxu0 %v311
    %372 = vmatpush1.bf16.msra.mxu0 %v310
    %373 = vmatprep.subr.bf16.mxu0 %v347
    %374 = vmatpush1.bf16.msra.mxu0 %v344
    %375 = vmatprep.subr.bf16.mxu0 0
    %376 = vmatpush1.bf16.msra.mxu0 0
    %377 = vmatprep.subr.bf16.mxu0 0
    %378 = vmatpush1.bf16.msra.mxu0 0
    %379 = vmatprep.subr.bf16.mxu0 0
    %380 = vmatpush1.bf16.msra.mxu0 0
    %381 = vmatprep.mubr.bf16.mxu0 %v340
    %382 = vmatmul.mubr.bf16.gmra.mrb[0].mxu0 %v118
    %v383 = vpop.f32.mrb[0].mxu0
    %v384 = vadd.f32 %v204, %v383
    %v385 = vpop.f32.mrb[0].mxu0
    %v386 = vadd.f32 %v206, %v385
    %v387 = vpop.f32.mrb[0].mxu0
    %v388 = vpop.f32.mrb[0].mxu0
    %389 = vdwg.mxu0
    %v390 = vld [vmem:[%s5] sm:$0x3]
    %v392 = vlaneseq
    %v393 = vshrl.u32 %v392, 7
    %v394 = vsub.s32 0, %v393
    %v395 = vrot.slane %v390, %v394
    %v396 = vlaneseq
    %v397 = vshrl.u32 %v396, 7
    %v398 = vsub.s32 1, %v397
    %v399 = vrot.slane %v390, %v398
    %v402 = vadd.f32 %v384, %v395
    %v403 = vadd.f32 %v386, %v399
    %v404 = vmax.f32 %v402, 0.0
    %v405 = vmax.f32 %v403, 0.0
    %v406 = vpack.c.bf16 %v404, %v404
    %v407 = vpack.c.bf16 %v405, %v405
    %v408 = vld [vmem:[#allocation8] sm:$0xff]
    %v409 = vld [vmem:[#allocation8 + $0x8] sm:$0xff]
    %v410 = vld [vmem:[#allocation8 + $0x10] sm:$0xff]
    %v411 = vld [vmem:[#allocation8 + $0x18] sm:$0xff]
    %v412 = vld [vmem:[#allocation8 + $0x20] sm:$0xff]
    %v413 = vld [vmem:[#allocation8 + $0x28] sm:$0xff]
    %v414 = vld [vmem:[#allocation8 + $0x30] sm:$0xff]
    %v415 = vld [vmem:[#allocation8 + $0x38] sm:$0xff]
    %v416 = vld [vmem:[#allocation8 + $0x40] sm:$0xff]
    %v417 = vld [vmem:[#allocation8 + $0x48] sm:$0xff]
    %v418 = vld [vmem:[#allocation8 + $0x50] sm:$0xff]
    %v419 = vld [vmem:[#allocation8 + $0x58] sm:$0xff]
    %v420 = vld [vmem:[#allocation8 + $0x60] sm:$0xff]
    %v421 = vld [vmem:[#allocation8 + $0x68] sm:$0xff]
    %v422 = vld [vmem:[#allocation8 + $0x70] sm:$0xff]
    %v423 = vld [vmem:[#allocation8 + $0x78] sm:$0xff]
    %v424 = vld [vmem:[#allocation8 + $0x80] sm:$0xff]
    %v425 = vld [vmem:[#allocation8 + $0x88] sm:$0xff]
    %v426 = vld [vmem:[#allocation8 + $0x90] sm:$0xff]
    %v427 = vld [vmem:[#allocation8 + $0x98] sm:$0xff]
    %v428 = vld [vmem:[#allocation8 + $0xa0] sm:$0xff]
    %v429 = vld [vmem:[#allocation8 + $0xa8] sm:$0xff]
    %v430 = vld [vmem:[#allocation8 + $0xb0] sm:$0xff]
    %v431 = vld [vmem:[#allocation8 + $0xb8] sm:$0xff]
    %v432 = vld [vmem:[#allocation8 + $0xc0] sm:$0xff]
    %v433 = vld [vmem:[#allocation8 + $0xc8] sm:$0xff]
    %v434 = vld [vmem:[#allocation8 + $0xd0] sm:$0xff]
    %v435 = vld [vmem:[#allocation8 + $0xd8] sm:$0xff]
    %v436 = vld [vmem:[#allocation8 + $0xe0] sm:$0xff]
    %v437 = vld [vmem:[#allocation8 + $0xe8] sm:$0xff]
    %v438 = vld [vmem:[#allocation8 + $0xf0] sm:$0xff]
    %v439 = vld [vmem:[#allocation8 + $0xf8] sm:$0xff]
    %v440 = vld [vmem:[%s7] sm:$0x3]
    %v442 = vlaneseq
    %v443 = vshrl.u32 %v442, 7
    %v444 = vsub.s32 0, %v443
    %v445 = vrot.slane %v440, %v444
    %v446 = vlaneseq
    %v447 = vshrl.u32 %v446, 7
    %v448 = vsub.s32 1, %v447
    %v449 = vrot.slane %v440, %v448
    %v484 = vunpack.c.l.b16 %v408
    %v485 = vunpack.c.h.b16 %v408
    %v486 = vunpack.c.l.b16 %v409
    %v487 = vunpack.c.h.b16 %v409
    %v488 = vunpack.c.l.b16 %v410
    %v489 = vunpack.c.h.b16 %v410
    %v490 = vunpack.c.l.b16 %v411
    %v491 = vunpack.c.h.b16 %v411
    %v492 = vunpack.c.l.b16 %v412
    %v493 = vunpack.c.h.b16 %v412
    %v494 = vunpack.c.l.b16 %v413
    %v495 = vunpack.c.h.b16 %v413
    %v496 = vunpack.c.l.b16 %v414
    %v497 = vunpack.c.h.b16 %v414
    %v498 = vunpack.c.l.b16 %v415
    %v499 = vunpack.c.h.b16 %v415
    %v500 = vunpack.c.l.b16 %v416
    %v501 = vunpack.c.h.b16 %v416
    %v502 = vunpack.c.l.b16 %v417
    %v503 = vunpack.c.h.b16 %v417
    %v504 = vunpack.c.l.b16 %v418
    %v505 = vunpack.c.h.b16 %v418
    %v506 = vunpack.c.l.b16 %v419
    %v507 = vunpack.c.h.b16 %v419
    %v508 = vunpack.c.l.b16 %v420
    %v509 = vunpack.c.h.b16 %v420
    %v510 = vunpack.c.l.b16 %v421
    %v511 = vunpack.c.h.b16 %v421
    %v512 = vunpack.c.l.b16 %v422
    %v513 = vunpack.c.h.b16 %v422
    %v514 = vunpack.c.l.b16 %v423
    %v515 = vunpack.c.h.b16 %v423
    %v516 = vunpack.c.l.b16 %v424
    %v517 = vunpack.c.h.b16 %v424
    %v518 = vunpack.c.l.b16 %v425
    %v519 = vunpack.c.h.b16 %v425
    %v520 = vunpack.c.l.b16 %v426
    %v521 = vunpack.c.h.b16 %v426
    %v522 = vunpack.c.l.b16 %v427
    %v523 = vunpack.c.h.b16 %v427
    %v524 = vunpack.c.l.b16 %v428
    %v525 = vunpack.c.h.b16 %v428
    %v526 = vunpack.c.l.b16 %v429
    %v527 = vunpack.c.h.b16 %v429
    %v528 = vunpack.c.l.b16 %v430
    %v529 = vunpack.c.h.b16 %v430
    %v530 = vunpack.c.l.b16 %v431
    %v531 = vunpack.c.h.b16 %v431
    %v532 = vunpack.c.l.b16 %v432
    %v533 = vunpack.c.h.b16 %v432
    %v534 = vunpack.c.l.b16 %v433
    %v535 = vunpack.c.h.b16 %v433
    %v536 = vunpack.c.l.b16 %v434
    %v537 = vunpack.c.h.b16 %v434
    %v538 = vunpack.c.l.b16 %v435
    %v539 = vunpack.c.h.b16 %v435
    %v540 = vunpack.c.l.b16 %v436
    %v541 = vunpack.c.h.b16 %v436
    %v542 = vunpack.c.l.b16 %v437
    %v543 = vunpack.c.h.b16 %v437
    %v544 = vunpack.c.l.b16 %v438
    %v545 = vunpack.c.h.b16 %v438
    %v546 = vunpack.c.l.b16 %v439
    %v547 = vunpack.c.h.b16 %v439
    %v548 = vpack.c.b16 %v486, %v484
    %v549 = vpack.c.b16 %v487, %v485
    %v550 = vpack.c.b16 %v490, %v488
    %v551 = vpack.c.b16 %v491, %v489
    %v552 = vpack.c.b16 %v494, %v492
    %v553 = vpack.c.b16 %v495, %v493
    %v554 = vpack.c.b16 %v498, %v496
    %v555 = vpack.c.b16 %v499, %v497
    %v556 = vpack.c.b16 %v502, %v500
    %v557 = vpack.c.b16 %v503, %v501
    %v558 = vpack.c.b16 %v506, %v504
    %v559 = vpack.c.b16 %v507, %v505
    %v560 = vpack.c.b16 %v510, %v508
    %v561 = vpack.c.b16 %v511, %v509
    %v562 = vpack.c.b16 %v514, %v512
    %v563 = vpack.c.b16 %v515, %v513
    %v564 = vpack.c.b16 %v518, %v516
    %v565 = vpack.c.b16 %v519, %v517
    %v566 = vpack.c.b16 %v522, %v520
    %v567 = vpack.c.b16 %v523, %v521
    %v568 = vpack.c.b16 %v526, %v524
    %v569 = vpack.c.b16 %v527, %v525
    %v570 = vpack.c.b16 %v530, %v528
    %v571 = vpack.c.b16 %v531, %v529
    %v572 = vpack.c.b16 %v534, %v532
    %v573 = vpack.c.b16 %v535, %v533
    %v574 = vpack.c.b16 %v538, %v536
    %v575 = vpack.c.b16 %v539, %v537
    %v576 = vpack.c.b16 %v542, %v540
    %v577 = vpack.c.b16 %v543, %v541
    %v578 = vpack.c.b16 %v546, %v544
    %v579 = vpack.c.b16 %v547, %v545
    %612 = vmatprep.subr.bf16.mxu0 %v549
    %613 = vmatpush1.bf16.msra.mxu0 %v548
    %614 = vmatprep.subr.bf16.mxu0 %v551
    %615 = vmatpush1.bf16.msra.mxu0 %v550
    %616 = vmatprep.subr.bf16.mxu0 %v553
    %617 = vmatpush1.bf16.msra.mxu0 %v552
    %618 = vmatprep.subr.bf16.mxu0 %v555
    %619 = vmatpush1.bf16.msra.mxu0 %v554
    %620 = vmatprep.subr.bf16.mxu0 %v557
    %621 = vmatpush1.bf16.msra.mxu0 %v556
    %622 = vmatprep.subr.bf16.mxu0 %v559
    %623 = vmatpush1.bf16.msra.mxu0 %v558
    %624 = vmatprep.subr.bf16.mxu0 %v561
    %625 = vmatpush1.bf16.msra.mxu0 %v560
    %626 = vmatprep.subr.bf16.mxu0 %v563
    %627 = vmatpush1.bf16.msra.mxu0 %v562
    %628 = vmatprep.subr.bf16.mxu0 %v565
    %629 = vmatpush1.bf16.msra.mxu0 %v564
    %630 = vmatprep.subr.bf16.mxu0 %v567
    %631 = vmatpush1.bf16.msra.mxu0 %v566
    %632 = vmatprep.subr.bf16.mxu0 %v569
    %633 = vmatpush1.bf16.msra.mxu0 %v568
    %634 = vmatprep.subr.bf16.mxu0 %v571
    %635 = vmatpush1.bf16.msra.mxu0 %v570
    %636 = vmatprep.subr.bf16.mxu0 %v573
    %637 = vmatpush1.bf16.msra.mxu0 %v572
    %638 = vmatprep.subr.bf16.mxu0 %v575
    %639 = vmatpush1.bf16.msra.mxu0 %v574
    %640 = vmatprep.subr.bf16.mxu0 %v577
    %641 = vmatpush1.bf16.msra.mxu0 %v576
    %642 = vmatprep.subr.bf16.mxu0 %v579
    %643 = vmatpush1.bf16.msra.mxu0 %v578
    %644 = vmatprep.mubr.bf16.mxu0 %v407
    %645 = vmatmul.mubr.bf16.gmra.mrb[0].mxu0 %v406
    %v646 = vpop.f32.mrb[0].mxu0
    %v647 = vadd.f32 %v445, %v646
    %v648 = vpop.f32.mrb[0].mxu0
    %v649 = vadd.f32 %v449, %v648
    %v650 = vpop.f32.mrb[0].mxu0
    %v651 = vpop.f32.mrb[0].mxu0
    %652 = vdwg.mxu0
    %v653 = vmax.f32 %v647, 0.0
    %v654 = vmax.f32 %v649, 0.0
    %v655 = vpack.c.bf16 %v653, %v653
    %v656 = vpack.c.bf16 %v654, %v654
    %v657 = vld [vmem:[#allocation10] sm:$0xf]
    %v658 = vld [vmem:[#allocation10 + $0x4] sm:$0xf]
    %v659 = vld [vmem:[#allocation10 + $0x8] sm:$0xf]
    %v660 = vld [vmem:[#allocation10 + $0xc] sm:$0xf]
    %v661 = vld [vmem:[#allocation10 + $0x10] sm:$0xf]
    %v662 = vld [vmem:[#allocation10 + $0x14] sm:$0xf]
    %v663 = vld [vmem:[#allocation10 + $0x18] sm:$0xf]
    %v664 = vld [vmem:[#allocation10 + $0x1c] sm:$0xf]
    %v665 = vld [vmem:[#allocation10 + $0x20] sm:$0xf]
    %v666 = vld [vmem:[#allocation10 + $0x24] sm:$0xf]
    %v667 = vld [vmem:[#allocation10 + $0x28] sm:$0xf]
    %v668 = vld [vmem:[#allocation10 + $0x2c] sm:$0xf]
    %v669 = vld [vmem:[#allocation10 + $0x30] sm:$0xf]
    %v670 = vld [vmem:[#allocation10 + $0x34] sm:$0xf]
    %v671 = vld [vmem:[#allocation10 + $0x38] sm:$0xf]
    %v672 = vld [vmem:[#allocation10 + $0x3c] sm:$0xf]
    %v673 = vld [vmem:[#allocation10 + $0x40] sm:$0xf]
    %v674 = vld [vmem:[#allocation10 + $0x44] sm:$0xf]
    %v675 = vld [vmem:[#allocation10 + $0x48] sm:$0xf]
    %v676 = vld [vmem:[#allocation10 + $0x4c] sm:$0xf]
    %v677 = vld [vmem:[#allocation10 + $0x50] sm:$0xf]
    %v678 = vld [vmem:[#allocation10 + $0x54] sm:$0xf]
    %v679 = vld [vmem:[#allocation10 + $0x58] sm:$0xf]
    %v680 = vld [vmem:[#allocation10 + $0x5c] sm:$0xf]
    %v681 = vld [vmem:[#allocation10 + $0x60] sm:$0xf]
    %v682 = vld [vmem:[#allocation10 + $0x64] sm:$0xf]
    %v683 = vld [vmem:[#allocation10 + $0x68] sm:$0xf]
    %v684 = vld [vmem:[#allocation10 + $0x6c] sm:$0xf]
    %v685 = vld [vmem:[#allocation10 + $0x70] sm:$0xf]
    %v686 = vld [vmem:[#allocation10 + $0x74] sm:$0xf]
    %v687 = vld [vmem:[#allocation10 + $0x78] sm:$0xf]
    %v688 = vld [vmem:[#allocation10 + $0x7c] sm:$0xf]
    %v689 = vld [vmem:[%s9] sm:$0x1]
    %v691 = vlaneseq
    %v692 = vshrl.u32 %v691, 7
    %v693 = vsub.s32 0, %v692
    %v694 = vrot.slane %v689, %v693
    %v728 = vunpack.c.l.b16 %v657
    %v729 = vunpack.c.l.b16 %v658
    %v730 = vunpack.c.l.b16 %v659
    %v731 = vunpack.c.l.b16 %v660
    %v732 = vunpack.c.l.b16 %v661
    %v733 = vunpack.c.l.b16 %v662
    %v734 = vunpack.c.l.b16 %v663
    %v735 = vunpack.c.l.b16 %v664
    %v736 = vunpack.c.l.b16 %v665
    %v737 = vunpack.c.l.b16 %v666
    %v738 = vunpack.c.l.b16 %v667
    %v739 = vunpack.c.l.b16 %v668
    %v740 = vunpack.c.l.b16 %v669
    %v741 = vunpack.c.l.b16 %v670
    %v742 = vunpack.c.l.b16 %v671
    %v743 = vunpack.c.l.b16 %v672
    %v744 = vunpack.c.l.b16 %v673
    %v745 = vunpack.c.l.b16 %v674
    %v746 = vunpack.c.l.b16 %v675
    %v747 = vunpack.c.l.b16 %v676
    %v748 = vunpack.c.l.b16 %v677
    %v749 = vunpack.c.l.b16 %v678
    %v750 = vunpack.c.l.b16 %v679
    %v751 = vunpack.c.l.b16 %v680
    %v752 = vunpack.c.l.b16 %v681
    %v753 = vunpack.c.l.b16 %v682
    %v754 = vunpack.c.l.b16 %v683
    %v755 = vunpack.c.l.b16 %v684
    %v756 = vunpack.c.l.b16 %v685
    %v757 = vunpack.c.l.b16 %v686
    %v758 = vunpack.c.l.b16 %v687
    %v759 = vunpack.c.l.b16 %v688
    %v760 = vpack.c.b16 %v729, %v728
    %v761 = vpack.c.b16 %v731, %v730
    %v762 = vpack.c.b16 %v733, %v732
    %v763 = vpack.c.b16 %v735, %v734
    %v764 = vpack.c.b16 %v737, %v736
    %v765 = vpack.c.b16 %v739, %v738
    %v766 = vpack.c.b16 %v741, %v740
    %v767 = vpack.c.b16 %v743, %v742
    %v768 = vpack.c.b16 %v745, %v744
    %v769 = vpack.c.b16 %v747, %v746
    %v770 = vpack.c.b16 %v749, %v748
    %v771 = vpack.c.b16 %v751, %v750
    %v772 = vpack.c.b16 %v753, %v752
    %v773 = vpack.c.b16 %v755, %v754
    %v774 = vpack.c.b16 %v757, %v756
    %v775 = vpack.c.b16 %v759, %v758
    %792 = vmatprep.subr.bf16.mxu0 0
    %793 = vmatpush1.bf16.msra.mxu0 %v760
    %794 = vmatprep.subr.bf16.mxu0 0
    %795 = vmatpush1.bf16.msra.mxu0 %v761
    %796 = vmatprep.subr.bf16.mxu0 0
    %797 = vmatpush1.bf16.msra.mxu0 %v762
    %798 = vmatprep.subr.bf16.mxu0 0
    %799 = vmatpush1.bf16.msra.mxu0 %v763
    %800 = vmatprep.subr.bf16.mxu0 0
    %801 = vmatpush1.bf16.msra.mxu0 %v764
    %802 = vmatprep.subr.bf16.mxu0 0
    %803 = vmatpush1.bf16.msra.mxu0 %v765
    %804 = vmatprep.subr.bf16.mxu0 0
    %805 = vmatpush1.bf16.msra.mxu0 %v766
    %806 = vmatprep.subr.bf16.mxu0 0
    %807 = vmatpush1.bf16.msra.mxu0 %v767
    %808 = vmatprep.subr.bf16.mxu0 0
    %809 = vmatpush1.bf16.msra.mxu0 %v768
    %810 = vmatprep.subr.bf16.mxu0 0
    %811 = vmatpush1.bf16.msra.mxu0 %v769
    %812 = vmatprep.subr.bf16.mxu0 0
    %813 = vmatpush1.bf16.msra.mxu0 %v770
    %814 = vmatprep.subr.bf16.mxu0 0
    %815 = vmatpush1.bf16.msra.mxu0 %v771
    %816 = vmatprep.subr.bf16.mxu0 0
    %817 = vmatpush1.bf16.msra.mxu0 %v772
    %818 = vmatprep.subr.bf16.mxu0 0
    %819 = vmatpush1.bf16.msra.mxu0 %v773
    %820 = vmatprep.subr.bf16.mxu0 0
    %821 = vmatpush1.bf16.msra.mxu0 %v774
    %822 = vmatprep.subr.bf16.mxu0 0
    %823 = vmatpush1.bf16.msra.mxu0 %v775
    %824 = vmatprep.mubr.bf16.mxu0 %v656
    %825 = vmatmul.mubr.bf16.gmra.mrb[0].mxu0 %v655
    %v826 = vpop.f32.mrb[0].mxu0
    %v827 = vadd.f32 %v694, %v826
    %v828 = vpop.f32.mrb[0].mxu0
    %v829 = vpop.f32.mrb[0].mxu0
    %v830 = vpop.f32.mrb[0].mxu0
    %831 = vdwg.mxu0
    %v832 = vpack.c.bf16 %v827, %v827
    %833 = vst [vmem:[#allocation11] sm:$0x1] %v832
    %v834 = vld [vmem:[%s2] sm:$0xf]
    %vm835 = vcmask 1041408
    %vm836 = vcmask 297986
    %vm837 = vmor %vm836, %vm835
    %838 = vst.msk [vmem:[#allocation12] sm:$0xf] %vm837, %v834
    %v839 = vunpack.c.l.bf16 %v832
    %vm840 = vcmask 534008
    %841 = vst.msk [vmem:[#allocation12] sm:$0x3] %vm840, %v839
    // Predicated region
    $region62: #{tpu_custom_call.1} parent=1 // pred_check
      _
    $region63: #{tpu_custom_call.1} parent=1 // pred_check_branch
      %843 = sbr.rel (0) target = $region65
    $region64: #{tpu_custom_call.1} parent=1 // pred_region
      %s845 = ssub.s32 16, 16
      %846 = vsyncadd [#allocation4], %s845
      %s848 = sshll.u32 [#allocation11], 4
      %s849 = int_to_ptr.vmem [resolvable:$true] %s848
      %851 = dma.vmem_to_hbm [thread:$0]  %s849, 16, %s10, [#allocation4]
    $region65: #{tpu_custom_call.1} parent=1 // pred_fallthru
      _
    // Predicated region
    $region66: #{tpu_custom_call.1} parent=1 // pred_check
      _
    $region67: #{tpu_custom_call.1} parent=1 // pred_check_branch
      %853 = sbr.rel (0) target = $region69
    $region68: #{tpu_custom_call.1} parent=1 // pred_region
      %s855 = ssub.s32 64, 64
      %856 = vsyncadd [#allocation13], %s855
      %s858 = sshll.u32 [#allocation12], 4
      %s859 = int_to_ptr.vmem [resolvable:$true] %s858
      %861 = dma.vmem_to_hbm [thread:$0]  %s859, 64, %s11, [#allocation13]
    $region69: #{tpu_custom_call.1} parent=1 // pred_fallthru
      _
    // Predicated region
    $region70: #{tpu_custom_call.1} parent=1 // pred_check
      _
    $region71: #{tpu_custom_call.1} parent=1 // pred_check_branch
      %863 = sbr.rel (0) target = $region73
    $region72: #{tpu_custom_call.1} parent=1 // pred_region
      %864 = dma.done [#allocation4], 16
    $region73: #{tpu_custom_call.1} parent=1 // pred_fallthru
      _
    // Predicated region
    $region74: #{tpu_custom_call.1} parent=1 // pred_check
      _
    $region75: #{tpu_custom_call.1} parent=1 // pred_check_branch
      %866 = sbr.rel (0) target = $region77
    $region76: #{tpu_custom_call.1} parent=1 // pred_region
      %867 = dma.done [#allocation13], 64
    $region77: #{tpu_custom_call.1} parent=1 // pred_fallthru
      _
    %868 = vsyncpa [#allocation3], 1
    %869 = vsyncpa [#allocation6], 1
    %870 = vsyncpa [#allocation9], 1
    %871 = vsyncpa [#allocation4], 1
    %872 = vsyncpa [#allocation13], 1

</llo_original>
